<compile_context>
chip_gen: v7x
topology: tpu7x:2x2x1
jax: 0.10.0
libtpu: 0.0.40
codegen_flags: <defaults>
</compile_context>

<pallas_src>
from functools import partial

import jax
import jax.numpy as jnp
from jax.experimental import pallas as pl
from jax.experimental.pallas import tpu as pltpu

LN_EPS = 1e-5  # torch.nn.LayerNorm default eps


def dnm_conv_fold_kernel(x_ref, w_ref, gamma_ref, beta_ref, q_ref, o_ref, *, M, O):
    # x_ref:     (1, C, T)    VMEM   (T = HW tile, lane-dense)
    # w_ref:     (M*O, C)     VMEM   (concatenated weights)
    # gamma_ref: (C, 1)       VMEM   (LayerNorm weight)
    # beta_ref:  (C, 1)       VMEM   (LayerNorm bias)
    # q_ref:     (1,)         SMEM   scalar
    # o_ref:     (1, O, T)    VMEM
    x = x_ref[0].astype(jnp.float32)                        # [C, T]

    # LayerNorm over the channel (sublane) axis -- biased variance, like torch.
    mean = jnp.mean(x, axis=0, keepdims=True)               # [1, T]
    cen = x - mean
    var = jnp.mean(cen * cen, axis=0, keepdims=True)        # [1, T]
    xn = cen * jax.lax.rsqrt(var + LN_EPS)
    xn = xn * gamma_ref[...] + beta_ref[...]                # [C, T]

    q = q_ref[0]

    # One fused MXU matmul for all M "synapse" maps: [M*O, C] @ [C, T] -> [M*O, T].
    w = w_ref[...].astype(jnp.float32)
    s = jnp.dot(w, xn, preferred_element_type=jnp.float32)  # [M*O, T]

    # relu(s_m - q) = max(s_m, q) - q ; sum the M row-groups, subtract M*q once.
    acc = jnp.maximum(s[0:O, :], q)
    for m in range(1, M):
        acc = acc + jnp.maximum(s[m * O:(m + 1) * O, :], q)
    o_ref[0] = (acc - jnp.float32(M) * q).astype(o_ref.dtype)


def _pick_hw_tile(HW, max_tile=2048):
    """Largest multiple of 128 that divides HW and is <= max_tile (v7x-safe)."""
    if HW <= max_tile:
        return HW
    t = (max_tile // 128) * 128
    while t >= 128:
        if HW % t == 0:
            return t
        t -= 128
    # Fallback: single full-extent block (only hit for HW with no 128-multiple
    # divisor <= max_tile; may need a larger vmem budget in that case).
    return HW


def dnm_conv_fold(x_nchw, dnm_w, q, gamma, beta):
    """x_nchw: [N, C, H, W]; dnm_w: [M, O, C, 1, 1]; q: [1]; gamma/beta: [C]."""
    N, C, H, Wsp = x_nchw.shape
    M, O, C2, _, _ = dnm_w.shape
    assert C == C2
    HW = H * Wsp
    T = _pick_hw_tile(HW)
    n_hw_tiles = HW // T

    # Glue: all free reshapes, no HBM transposes.
    x_ncl = x_nchw.reshape(N, C, HW)                 # channels-first, HW on lanes
    w_cat = dnm_w.reshape(M * O, C).astype(jnp.float32)
    gamma2 = gamma.reshape(C, 1).astype(jnp.float32)
    beta2 = beta.reshape(C, 1).astype(jnp.float32)
    q1 = q.reshape(1).astype(jnp.float32)

    cost = pl.CostEstimate(
        flops=2 * N * HW * C * M * O,
        transcendentals=0,
        bytes_accessed=(x_ncl.size + N * O * HW + w_cat.size) * 4,
    )

    out_nol = pl.pallas_call(
        partial(dnm_conv_fold_kernel, M=M, O=O),
        out_shape=jax.ShapeDtypeStruct((N, O, HW), jnp.float32),
        grid=(N, n_hw_tiles),
        in_specs=[
            pl.BlockSpec((1, C, T), lambda n, t: (n, 0, t)),
            pl.BlockSpec((M * O, C), lambda n, t: (0, 0)),
            pl.BlockSpec((C, 1), lambda n, t: (0, 0)),
            pl.BlockSpec((C, 1), lambda n, t: (0, 0)),
            pl.BlockSpec(memory_space=pltpu.SMEM),
        ],
        out_specs=pl.BlockSpec((1, O, T), lambda n, t: (n, 0, t)),
        compiler_params=pltpu.CompilerParams(
            dimension_semantics=("parallel", "parallel"),
        ),
        cost_estimate=cost,
    )(x_ncl, w_cat, gamma2, beta2, q1)

    # TODO(synk): the PyTorch model hardcodes F.fold to (384, 384); generalized
    # here to the input's own (H, W) since fold with a 1x1 kernel is a reshape.
    return out_nol.reshape(N, O, H, Wsp)


def _reference(x_nchw, dnm_w, q, gamma, beta):
    # Pure-JAX reference mirroring the PyTorch forward, for validation.
    N, C, H, Wsp = x_nchw.shape
    M, O, _, _, _ = dnm_w.shape
    x_nhwc = jnp.transpose(x_nchw, (0, 2, 3, 1))
    mean = jnp.mean(x_nhwc, axis=-1, keepdims=True)
    var = jnp.mean((x_nhwc - mean) ** 2, axis=-1, keepdims=True)
    xn = (x_nhwc - mean) / jnp.sqrt(var + LN_EPS) * gamma + beta
    w2 = dnm_w.reshape(M, O, C)
    out = jnp.zeros((N, O, H, Wsp), jnp.float32)
    for m in range(M):
        s = jnp.einsum("nhwc,oc->nohw", xn, w2[m]) - q[0]
        out = out + jnp.maximum(s, 0.0)
    return out


if __name__ == "__main__":
    # Small synthetic shapes: batch=2, input_size(C)=32, out_size=16, M=3, 16x16 spatial.
    N, C, O, M, H, Wsp = 2, 32, 16, 3, 16, 16

    key = jax.random.PRNGKey(0)
    kx, kw, kq = jax.random.split(key, 3)
    x = jax.random.normal(kx, (N, C, H, Wsp), dtype=jnp.float32)
    # torch.rand -> uniform [0, 1)
    dnm_w = jax.random.uniform(kw, (M, O, C, 1, 1), dtype=jnp.float32)
    q = jax.random.uniform(kq, (1,), dtype=jnp.float32)
    # LayerNorm affine params at their torch init values.
    gamma = jnp.ones((C,), jnp.float32)
    beta = jnp.zeros((C,), jnp.float32)

    out = dnm_conv_fold(x, dnm_w, q, gamma, beta)
    out = jax.block_until_ready(out)

    ref = _reference(x, dnm_w, q, gamma, beta)
    assert out.shape == (N, O, H, Wsp)
    assert jnp.allclose(out, ref, atol=1e-4, rtol=1e-4), "mismatch vs reference"

    print("KERNEL_OK")
</pallas_src>

<mosaic_0001>
module attributes {stable_mosaic.version = 11 : i64} {
  func.func @dnm_conv_fold_kernel(%arg0: i32, %arg1: i32, %arg2: memref<1x32x256xf32, #tpu.memory_space<vmem>>, %arg3: memref<48x32xf32, #tpu.memory_space<vmem>>, %arg4: memref<32x1xf32, #tpu.memory_space<vmem>>, %arg5: memref<32x1xf32, #tpu.memory_space<vmem>>, %arg6: memref<1xf32, #tpu.memory_space<smem>>, %arg7: memref<1x16x256xf32, #tpu.memory_space<vmem>>) attributes {dimension_semantics = [#tpu.dimension_semantics<parallel>, #tpu.dimension_semantics<parallel>], iteration_bounds = array<i64: 2, 1>, scalar_prefetch = 0 : i64, scratch_operands = 0 : i64, tpu.core_type = #tpu.core_type<tc>, window_params = [{transform_indices = @transform_0, window_bounds = array<i64: 1, 32, 256>}, {pipeline_mode = #tpu.pipeline_mode<synchronous>, transform_indices = @transform_1, window_bounds = array<i64: 48, 32>}, {pipeline_mode = #tpu.pipeline_mode<synchronous>, transform_indices = @transform_2, window_bounds = array<i64: 32, 1>}, {pipeline_mode = #tpu.pipeline_mode<synchronous>, transform_indices = @transform_3, window_bounds = array<i64: 32, 1>}, {transform_indices = @transform_4, window_bounds = array<i64: 1>}, {transform_indices = @transform_5, window_bounds = array<i64: 1, 16, 256>}]} {
    %c0 = arith.constant 0 : index
    %c0_0 = arith.constant 0 : index
    %c0_1 = arith.constant 0 : index
    %0 = vector.load %arg2[%c0, %c0_0, %c0_1] : memref<1x32x256xf32, #tpu.memory_space<vmem>>, vector<1x32x256xf32>
    %1 = vector.shape_cast %0 : vector<1x32x256xf32> to vector<32x256xf32>
    %cst = arith.constant dense<0.000000e+00> : vector<256xf32>
    %2 = vector.multi_reduction <add>, %1, %cst [0] : vector<32x256xf32> to vector<256xf32>
    %3 = vector.shape_cast %2 : vector<256xf32> to vector<1x256xf32>
    %cst_2 = arith.constant 3.200000e+01 : f32
    %4 = vector.broadcast %cst_2 : f32 to vector<1x256xf32>
    %5 = arith.divf %3, %4 : vector<1x256xf32>
    %6 = vector.broadcast %5 : vector<1x256xf32> to vector<32x256xf32>
    %7 = arith.subf %1, %6 : vector<32x256xf32>
    %8 = arith.mulf %7, %7 : vector<32x256xf32>
    %cst_3 = arith.constant dense<0.000000e+00> : vector<256xf32>
    %9 = vector.multi_reduction <add>, %8, %cst_3 [0] : vector<32x256xf32> to vector<256xf32>
    %10 = vector.shape_cast %9 : vector<256xf32> to vector<1x256xf32>
    %cst_4 = arith.constant 3.200000e+01 : f32
    %11 = vector.broadcast %cst_4 : f32 to vector<1x256xf32>
    %12 = arith.divf %10, %11 : vector<1x256xf32>
    %cst_5 = arith.constant 9.99999974E-6 : f32
    %13 = vector.broadcast %cst_5 : f32 to vector<1x256xf32>
    %14 = arith.addf %12, %13 : vector<1x256xf32>
    %15 = math.rsqrt %14 : vector<1x256xf32>
    %16 = vector.broadcast %15 : vector<1x256xf32> to vector<32x256xf32>
    %17 = arith.mulf %7, %16 : vector<32x256xf32>
    %c0_6 = arith.constant 0 : index
    %c0_7 = arith.constant 0 : index
    %18 = vector.load %arg4[%c0_6, %c0_7] : memref<32x1xf32, #tpu.memory_space<vmem>>, vector<32x1xf32>
    %19 = vector.broadcast %18 : vector<32x1xf32> to vector<32x256xf32>
    %20 = arith.mulf %17, %19 : vector<32x256xf32>
    %c0_8 = arith.constant 0 : index
    %c0_9 = arith.constant 0 : index
    %21 = vector.load %arg5[%c0_8, %c0_9] : memref<32x1xf32, #tpu.memory_space<vmem>>, vector<32x1xf32>
    %22 = vector.broadcast %21 : vector<32x1xf32> to vector<32x256xf32>
    %23 = arith.addf %20, %22 : vector<32x256xf32>
    %c0_10 = arith.constant 0 : index
    %24 = memref.load %arg6[%c0_10] : memref<1xf32, #tpu.memory_space<smem>>
    %c0_11 = arith.constant 0 : index
    %c0_12 = arith.constant 0 : index
    %25 = vector.load %arg3[%c0_11, %c0_12] : memref<48x32xf32, #tpu.memory_space<vmem>>, vector<48x32xf32>
    %cst_13 = arith.constant dense<0.000000e+00> : vector<48x256xf32>
    %26 = tpu.matmul %25, %23, %cst_13 {dimension_numbers = #tpu.dot_dimension_numbers<[1], [0], [0], [1], [0, 0, 1, 1], [], []>} : vector<48x32xf32>, vector<32x256xf32>, vector<48x256xf32> -> vector<48x256xf32>
    %27 = vector.extract_strided_slice %26 {offsets = [0, 0], sizes = [16, 256], strides = [1, 1]} : vector<48x256xf32> to vector<16x256xf32>
    %28 = vector.broadcast %24 : f32 to vector<16x256xf32>
    %29 = arith.maximumf %27, %28 : vector<16x256xf32>
    %30 = vector.extract_strided_slice %26 {offsets = [16, 0], sizes = [16, 256], strides = [1, 1]} : vector<48x256xf32> to vector<16x256xf32>
    %31 = vector.broadcast %24 : f32 to vector<16x256xf32>
    %32 = arith.maximumf %30, %31 : vector<16x256xf32>
    %33 = arith.addf %29, %32 : vector<16x256xf32>
    %34 = vector.extract_strided_slice %26 {offsets = [32, 0], sizes = [16, 256], strides = [1, 1]} : vector<48x256xf32> to vector<16x256xf32>
    %35 = vector.broadcast %24 : f32 to vector<16x256xf32>
    %36 = arith.maximumf %34, %35 : vector<16x256xf32>
    %37 = arith.addf %33, %36 : vector<16x256xf32>
    %cst_14 = arith.constant 3.000000e+00 : f32
    %38 = arith.mulf %cst_14, %24 : f32
    %39 = vector.broadcast %38 : f32 to vector<16x256xf32>
    %40 = arith.subf %37, %39 : vector<16x256xf32>
    %c0_15 = arith.constant 0 : index
    %c0_16 = arith.constant 0 : index
    %c0_17 = arith.constant 0 : index
    %41 = vector.load %arg7[%c0_15, %c0_16, %c0_17] : memref<1x16x256xf32, #tpu.memory_space<vmem>>, vector<1x16x256xf32>
    %42 = vector.shape_cast %41 : vector<1x16x256xf32> to vector<16x256xf32>
    %43 = vector.shape_cast %40 : vector<16x256xf32> to vector<1x16x256xf32>
    tpu.vector_store %arg7[%c0_15, %c0_16, %c0_17], %43 {strides = array<i32>} : memref<1x16x256xf32, #tpu.memory_space<vmem>>, vector<1x16x256xf32>,
    return
  }
  func.func @transform_0(%arg0: i32, %arg1: i32) -> (i32, i32, i32) {
    %c0_i32 = arith.constant 0 : i32
    %c0_i32_0 = arith.constant 0 : i32
    return %arg0, %c0_i32, %arg1 : i32, i32, i32
  }
  func.func @transform_1(%arg0: i32, %arg1: i32) -> (i32, i32) {
    %c0_i32 = arith.constant 0 : i32
    %c0_i32_0 = arith.constant 0 : i32
    %c0_i32_1 = arith.constant 0 : i32
    return %c0_i32, %c0_i32_0 : i32, i32
  }
  func.func @transform_2(%arg0: i32, %arg1: i32) -> (i32, i32) {
    %c0_i32 = arith.constant 0 : i32
    %c0_i32_0 = arith.constant 0 : i32
    %c0_i32_1 = arith.constant 0 : i32
    return %c0_i32, %c0_i32_0 : i32, i32
  }
  func.func @transform_3(%arg0: i32, %arg1: i32) -> (i32, i32) {
    %c0_i32 = arith.constant 0 : i32
    %c0_i32_0 = arith.constant 0 : i32
    %c0_i32_1 = arith.constant 0 : i32
    return %c0_i32, %c0_i32_0 : i32, i32
  }
  func.func @transform_4(%arg0: i32, %arg1: i32) -> i32 {
    %c0_i32 = arith.constant 0 : i32
    %c0_i32_0 = arith.constant 0 : i32
    return %c0_i32 : i32
  }
  func.func @transform_5(%arg0: i32, %arg1: i32) -> (i32, i32, i32) {
    %c0_i32 = arith.constant 0 : i32
    %c0_i32_0 = arith.constant 0 : i32
    return %arg0, %c0_i32, %arg1 : i32, i32, i32
  }
}

</mosaic_0001>

<llo_original>
// kernel: tpu_custom_call.1
$region0: #{tpu_custom_call.1}
  #allocation0 [shape = 'u32[]', space=smem, size = 0x4, offset = 0x4, fixed_abs, tag = 'smem constant byte address 0x4 - core index']
  #allocation1 [shape = 'u32[144,128]{1,0:T(1,128)}', space=vmem, size = 0x12000, scoped, tag = 'internal scratch']
  #allocation2 [shape = 'f32[1]{0:T(128)S(6)}', space=smem, size = 0x200, scoped, tag = 'scoped memory for tpu_custom_call.1']
  %s0 = inlined_call_operand.vmem [shape: f32[2,32,256], index: 0, kind: input, shape index: {}]
  %s1 = inlined_call_operand.vmem [shape: f32[48,32], index: 1, kind: input, shape index: {}]
  %s2 = inlined_call_operand.vmem [shape: f32[32,1], index: 2, kind: input, shape index: {}]
  %s3 = inlined_call_operand.vmem [shape: f32[32,1], index: 3, kind: input, shape index: {}]
  %s4 = inlined_call_operand.<no memory space> [shape: f32[1], index: 4, kind: input, shape index: {}]
  %s5 = inlined_call_operand.hbm [shape: f32[2,16,256], index: 5, kind: output, shape index: {}]
  %s6 = sld [smem:[#allocation0]]
  $region53: #{tpu_custom_call.1} parent=0
    _
  %s8 = ssub.s32 1, %s6
  %s9 = scalar_select 0, %s8, %s6
  %10 = sst [smem:[#allocation2]] %s4
  $region1: #{tpu_custom_call.1} parent=0
    #allocation3 [shape = 'u8[32768]{0}', space=vmem, size = 0x8000, scoped, tag = 'output window, operand 0']
    #allocation4 [shape = 's32[2]{0}', space=sflag, size = 0x8, scoped, tag = 'scoped memory for tpu_custom_call.1']
    %11 = vsyncpa [#allocation4], 0
    %s12 = scalar_lea.sflag [#allocation4], 1
    %13 = vsyncpa %s12, 0
    loop: start=0, step=1, limit=4
    $region2: #{tpu_custom_call.1} parent=1 // loop_pre_header
      _
    $region3: #{tpu_custom_call.1} parent=1 // loop_header
      %s15 = sphi 0, %s19
      %p16 = scmp.ge.s32.totalorder %s15, 4
      %s22 = sphi 0, %s34
      %s23 = sphi 0, %s30
      %s24 = sphi 0, %s22
      %s25 = sphi 0, %s23
      %s26 = sphi 0, %s24
      %s27 = sphi 0, %s25
      %s39 = sphi 0, %s41
      %s42 = sphi 0, %s39
      %s43 = sphi 0, %s42
      %s59 = sphi 0, %s43
      %s63 = sphi 0, %s63
      %s65 = sphi 0, %s63
      %s66 = sphi 0, %s65
      %s80 = sphi 0, %s66
      %s84 = sphi 0, %s84
      %s86 = sphi 0, %s84
      %s87 = sphi 0, %s86
      %s101 = sphi 0, %s87
      %s105 = sphi 0, %s105
      %s107 = sphi 0, %s105
      %s108 = sphi 0, %s107
      %s122 = sphi 0, %s108
      %s126 = sphi 0, %s126
      %s128 = sphi 0, %s126
      %s129 = sphi 0, %s128
      %s143 = sphi 0, %s129
      %s151 = sphi 0, %s153
      %s154 = sphi 0, %s151
      %s155 = sphi 0, %s154
      %s171 = sphi 0, %s155
    $region4: #{tpu_custom_call.1} parent=1 // loop_header_branch
      %18 = sbr.rel (%p16) target = $region8
    $region5: #{tpu_custom_call.1} parent=1 // loop_body
      %s20 = ssub.s32 %s15, 1
      %s21 = ssub.s32 %s15, 2
      %s28 = sadd.s32 1, %s23
      %p29 = scmp.ge.s32.totalorder %s28, 1
      %s30 = scalar_select %p29, 0, %s28
      %s31 = sadd.s32 1, %s22
      %s32 = scalar_select %p29, %s31, %s22
      %p33 = scmp.ge.s32.totalorder %s32, 2
      %s34 = scalar_select %p33, 0, %s32
      %s35 = ssub.s32 %s22, %s34
      %s36 = ssub.s32 %s23, %s30
      %s37 = sor.u32 %s35, %s36
      %p38 = scmp.eq.s32.totalorder %s37, 0
      %s40 = sadd.s32 %s39, 1
      %s41 = scalar_select %p38, %s39, %s40
      %p44 = pneg %p38
      %p45 = scmp.eq.s32.totalorder %s15, 1
      %p46 = por %p44, %p45
      %p47 = scmp.ne.s32.totalorder %s39, %s42
      %p48 = scmp.eq.s32.totalorder %s15, 0
      %p49 = por %p47, %p48
      %p50 = scmp.ne.s32.totalorder %s39, %s42
      %p51 = scmp.eq.s32.totalorder %s20, 1
      %p52 = por %p50, %p51
      %p53 = scmp.ne.s32.totalorder %s42, %s43
      %p54 = scmp.eq.s32.totalorder %s20, 0
      %p55 = por %p53, %p54
      %p56 = scmp.ne.s32.totalorder %s42, %s43
      %p57 = scmp.eq.s32.totalorder %s21, 1
      %p58 = por %p56, %p57
      %p60 = scmp.ne.s32.totalorder %s43, %s59
      %p61 = scmp.eq.s32.totalorder %s21, 0
      %p62 = por %p60, %p61
      %s64 = sadd.s32 %s63, 1
      %p67 = scmp.eq.s32.totalorder %s15, 1
      %p68 = scmp.ne.s32.totalorder %s63, %s65
      %p69 = scmp.eq.s32.totalorder %s15, 0
      %p70 = por %p68, %p69
      %p71 = scmp.ne.s32.totalorder %s63, %s65
      %p72 = scmp.eq.s32.totalorder %s20, 1
      %p73 = por %p71, %p72
      %p74 = scmp.ne.s32.totalorder %s65, %s66
      %p75 = scmp.eq.s32.totalorder %s20, 0
      %p76 = por %p74, %p75
      %p77 = scmp.ne.s32.totalorder %s65, %s66
      %p78 = scmp.eq.s32.totalorder %s21, 1
      %p79 = por %p77, %p78
      %p81 = scmp.ne.s32.totalorder %s66, %s80
      %p82 = scmp.eq.s32.totalorder %s21, 0
      %p83 = por %p81, %p82
      %s85 = sadd.s32 %s84, 1
      %p88 = scmp.eq.s32.totalorder %s15, 1
      %p89 = scmp.ne.s32.totalorder %s84, %s86
      %p90 = scmp.eq.s32.totalorder %s15, 0
      %p91 = por %p89, %p90
      %p92 = scmp.ne.s32.totalorder %s84, %s86
      %p93 = scmp.eq.s32.totalorder %s20, 1
      %p94 = por %p92, %p93
      %p95 = scmp.ne.s32.totalorder %s86, %s87
      %p96 = scmp.eq.s32.totalorder %s20, 0
      %p97 = por %p95, %p96
      %p98 = scmp.ne.s32.totalorder %s86, %s87
      %p99 = scmp.eq.s32.totalorder %s21, 1
      %p100 = por %p98, %p99
      %p102 = scmp.ne.s32.totalorder %s87, %s101
      %p103 = scmp.eq.s32.totalorder %s21, 0
      %p104 = por %p102, %p103
      %s106 = sadd.s32 %s105, 1
      %p109 = scmp.eq.s32.totalorder %s15, 1
      %p110 = scmp.ne.s32.totalorder %s105, %s107
      %p111 = scmp.eq.s32.totalorder %s15, 0
      %p112 = por %p110, %p111
      %p113 = scmp.ne.s32.totalorder %s105, %s107
      %p114 = scmp.eq.s32.totalorder %s20, 1
      %p115 = por %p113, %p114
      %p116 = scmp.ne.s32.totalorder %s107, %s108
      %p117 = scmp.eq.s32.totalorder %s20, 0
      %p118 = por %p116, %p117
      %p119 = scmp.ne.s32.totalorder %s107, %s108
      %p120 = scmp.eq.s32.totalorder %s21, 1
      %p121 = por %p119, %p120
      %p123 = scmp.ne.s32.totalorder %s108, %s122
      %p124 = scmp.eq.s32.totalorder %s21, 0
      %p125 = por %p123, %p124
      %s127 = sadd.s32 %s126, 1
      %p130 = scmp.eq.s32.totalorder %s15, 1
      %p131 = scmp.ne.s32.totalorder %s126, %s128
      %p132 = scmp.eq.s32.totalorder %s15, 0
      %p133 = por %p131, %p132
      %p134 = scmp.ne.s32.totalorder %s126, %s128
      %p135 = scmp.eq.s32.totalorder %s20, 1
      %p136 = por %p134, %p135
      %p137 = scmp.ne.s32.totalorder %s128, %s129
      %p138 = scmp.eq.s32.totalorder %s20, 0
      %p139 = por %p137, %p138
      %p140 = scmp.ne.s32.totalorder %s128, %s129
      %p141 = scmp.eq.s32.totalorder %s21, 1
      %p142 = por %p140, %p141
      %p144 = scmp.ne.s32.totalorder %s129, %s143
      %p145 = scmp.eq.s32.totalorder %s21, 0
      %p146 = por %p144, %p145
      %s147 = ssub.s32 %s22, %s34
      %s148 = ssub.s32 %s23, %s30
      %s149 = sor.u32 %s147, %s148
      %p150 = scmp.eq.s32.totalorder %s149, 0
      %s152 = sadd.s32 %s151, 1
      %s153 = scalar_select %p150, %s151, %s152
      %p156 = pneg %p150
      %p157 = scmp.eq.s32.totalorder %s15, 1
      %p158 = por %p156, %p157
      %p159 = scmp.ne.s32.totalorder %s151, %s154
      %p160 = scmp.eq.s32.totalorder %s15, 0
      %p161 = por %p159, %p160
      %p162 = scmp.ne.s32.totalorder %s151, %s154
      %p163 = scmp.eq.s32.totalorder %s20, 1
      %p164 = por %p162, %p163
      %p165 = scmp.ne.s32.totalorder %s154, %s155
      %p166 = scmp.eq.s32.totalorder %s20, 0
      %p167 = por %p165, %p166
      %p168 = scmp.ne.s32.totalorder %s154, %s155
      %p169 = scmp.eq.s32.totalorder %s21, 1
      %p170 = por %p168, %p169
      %p172 = scmp.ne.s32.totalorder %s155, %s171
      %p173 = scmp.eq.s32.totalorder %s21, 0
      %p174 = por %p172, %p173
      %p175 = scmp.le.s32.totalorder 1, %s15
      %p176 = scmp.lt.s32.totalorder %s15, 3
      %p177 = pnand %p175, %p176
      %p178 = pneg %p177
      // Predicated region
      $region9: #{tpu_custom_call.1} parent=5 // pred_check
        _
      $region10: #{tpu_custom_call.1} parent=5 // pred_check_branch
        %180 = sbr.rel (%p177) target = $region12
      $region11: #{tpu_custom_call.1} parent=5 // pred_region
        %s181 = ssub.s32 %s15, 1
        // Predicated region
        $region13: #{tpu_custom_call.1} parent=11 // pred_check
          %p182 = pneg %p76
        $region14: #{tpu_custom_call.1} parent=11 // pred_check_branch
          %184 = sbr.rel (%p182) target = $region16
        $region15: #{tpu_custom_call.1} parent=11 // pred_region
          _
        $region16: #{tpu_custom_call.1} parent=11 // pred_fallthru
          _
        // Predicated region
        $region17: #{tpu_custom_call.1} parent=11 // pred_check
          %p185 = pneg %p97
        $region18: #{tpu_custom_call.1} parent=11 // pred_check_branch
          %187 = sbr.rel (%p185) target = $region20
        $region19: #{tpu_custom_call.1} parent=11 // pred_region
          _
        $region20: #{tpu_custom_call.1} parent=11 // pred_fallthru
          _
        // Predicated region
        $region21: #{tpu_custom_call.1} parent=11 // pred_check
          %p188 = pneg %p118
        $region22: #{tpu_custom_call.1} parent=11 // pred_check_branch
          %190 = sbr.rel (%p188) target = $region24
        $region23: #{tpu_custom_call.1} parent=11 // pred_region
          _
        $region24: #{tpu_custom_call.1} parent=11 // pred_fallthru
          _
        // Predicated region
        $region25: #{tpu_custom_call.1} parent=11 // pred_check
          %p191 = pneg %p139
        $region26: #{tpu_custom_call.1} parent=11 // pred_check_branch
          %193 = sbr.rel (%p191) target = $region28
        $region27: #{tpu_custom_call.1} parent=11 // pred_region
          _
        $region28: #{tpu_custom_call.1} parent=11 // pred_fallthru
          _
      $region12: #{tpu_custom_call.1} parent=5 // pred_fallthru
        _
      %p194 = scmp.lt.s32.totalorder %s15, 2
      // Predicated region
      $region29: #{tpu_custom_call.1} parent=5 // pred_check
        %p195 = pneg %p194
      $region30: #{tpu_custom_call.1} parent=5 // pred_check_branch
        %197 = sbr.rel (%p195) target = $region32
      $region31: #{tpu_custom_call.1} parent=5 // pred_region
        // Predicated region
        $region33: #{tpu_custom_call.1} parent=31 // pred_check
          %p198 = pneg %p49
        $region34: #{tpu_custom_call.1} parent=31 // pred_check_branch
          %200 = sbr.rel (%p198) target = $region36
        $region35: #{tpu_custom_call.1} parent=31 // pred_region
          %s201 = smul.u32 2, %s23
          %p202 = scmp.lt.s32.totalorder %s22, 1
          %s203 = scalar_select %p202, %s22, 1
          %p204 = scmp.lt.s32.totalorder %s201, 1
          %s205 = scalar_select %p204, %s201, 1
          %s206 = smul.addr %s203, 8
          %s207 = sadd.s32 %s205, %s206
          %s208 = smul.addr %s207, 8
          %s209 = scalar_lea.vmem %s0, %s208
          %s210 = smul.u32 2, %s23
        $region36: #{tpu_custom_call.1} parent=31 // pred_fallthru
          _
      $region32: #{tpu_custom_call.1} parent=5 // pred_fallthru
        _
      %p211 = scmp.le.s32.totalorder 1, %s15
      %p212 = scmp.lt.s32.totalorder %s15, 3
      %p213 = pnand %p211, %p212
      %p214 = pneg %p213
      // Predicated region
      $region37: #{tpu_custom_call.1} parent=5 // pred_check
        _
      $region38: #{tpu_custom_call.1} parent=5 // pred_check_branch
        %216 = sbr.rel (%p213) target = $region40
      $region39: #{tpu_custom_call.1} parent=5 // pred_region
        %s217 = ssub.s32 %s15, 1
        %s218 = smul.u32 2, %s25
        %p219 = scmp.lt.s32.totalorder %s24, 1
        %s220 = scalar_select %p219, %s24, 1
        %p221 = scmp.lt.s32.totalorder %s218, 1
        %s222 = scalar_select %p221, %s218, 1
        %s223 = smul.addr %s220, 8
        %s224 = sadd.s32 %s222, %s223
        %s225 = smul.addr %s224, 8
        %s226 = scalar_lea.vmem %s0, %s225
        %p227 = pneg %p55
        %p228 = pneg %p52
        %p229 = pneg %p76
        %p230 = pneg %p73
        %p231 = pneg %p97
        %p232 = pneg %p94
        %p233 = pneg %p118
        %p234 = pneg %p115
        %p235 = pneg %p139
        %p236 = pneg %p136
        %p237 = pneg %p167
        %p238 = pneg %p164
        %s239 = sand.u32 %s154, 1
        %s240 = scalar_lea.sflag [#allocation4], %s239
        %s241 = sand.u32 %s154, 1
        %s242 = smul.addr %s241, 32
        %s243 = scalar_lea.vmem [#allocation3], %s242
        %s244 = smul.u32 2, %s25
        %p245 = scmp.lt.s32.totalorder %s24, 1
        %s246 = scalar_select %p245, %s24, 1
        %p247 = scmp.lt.s32.totalorder %s244, 1
        %s248 = scalar_select %p247, %s244, 1
        %s249 = smul.addr %s246, 8
        %s250 = sadd.s32 %s248, %s249
        %s251 = smul.addr %s250, 8
        %s252 = scalar_lea.vmem %s0, %s251
        %s253 = smul.u32 2, %s25
        %s254 = smul.u32 2, %s25
        %v255 = vld [vmem:[%s252] sm:$0xff]
        %v256 = vld [vmem:[%s252 + $0x8] sm:$0xff]
        %v257 = vld [vmem:[%s252 + $0x10] sm:$0xff]
        %v258 = vld [vmem:[%s252 + $0x18] sm:$0xff]
        %v259 = vld [vmem:[%s252 + $0x20] sm:$0xff]
        %v260 = vld [vmem:[%s252 + $0x28] sm:$0xff]
        %v261 = vld [vmem:[%s252 + $0x30] sm:$0xff]
        %v262 = vld [vmem:[%s252 + $0x38] sm:$0xff]
        %v263 = vadd.f32 %v255, %v257
        %v264 = vadd.f32 %v263, %v259
        %v265 = vadd.f32 %v264, %v261
        %v266 = vrot.slane %v265, 4
        %v267 = vadd.f32 %v265, %v266
        %v268 = vrot.slane %v267, 2
        %v269 = vadd.f32 %v267, %v268
        %v270 = vrot.slane %v269, 1
        %v271 = vadd.f32 %v269, %v270
        %v272 = vadd.f32 %v256, %v258
        %v273 = vadd.f32 %v272, %v260
        %v274 = vadd.f32 %v273, %v262
        %v275 = vrot.slane %v274, 4
        %v276 = vadd.f32 %v274, %v275
        %v277 = vrot.slane %v276, 2
        %v278 = vadd.f32 %v276, %v277
        %v279 = vrot.slane %v278, 1
        %v280 = vadd.f32 %v278, %v279
        %v281 = vrcp.pop 32.0
        %v282 = vmul.f32 %v271, %v281
        %v283 = vmul.f32 %v280, %v281
        %v284 = vsub.f32 %v255, %v282
        %v285 = vsub.f32 %v256, %v283
        %v286 = vsub.f32 %v257, %v282
        %v287 = vsub.f32 %v258, %v283
        %v288 = vsub.f32 %v259, %v282
        %v289 = vsub.f32 %v260, %v283
        %v290 = vsub.f32 %v261, %v282
        %v291 = vsub.f32 %v262, %v283
        %v292 = vmul.f32 %v284, %v284
        %v293 = vmul.f32 %v285, %v285
        %v294 = vmul.f32 %v286, %v286
        %v295 = vmul.f32 %v287, %v287
        %v296 = vmul.f32 %v288, %v288
        %v297 = vmul.f32 %v289, %v289
        %v298 = vmul.f32 %v290, %v290
        %v299 = vmul.f32 %v291, %v291
        %v300 = vadd.f32 %v292, %v294
        %v301 = vadd.f32 %v300, %v296
        %v302 = vadd.f32 %v301, %v298
        %v303 = vrot.slane %v302, 4
        %v304 = vadd.f32 %v302, %v303
        %v305 = vrot.slane %v304, 2
        %v306 = vadd.f32 %v304, %v305
        %v307 = vrot.slane %v306, 1
        %v308 = vadd.f32 %v306, %v307
        %v309 = vadd.f32 %v293, %v295
        %v310 = vadd.f32 %v309, %v297
        %v311 = vadd.f32 %v310, %v299
        %v312 = vrot.slane %v311, 4
        %v313 = vadd.f32 %v311, %v312
        %v314 = vrot.slane %v313, 2
        %v315 = vadd.f32 %v313, %v314
        %v316 = vrot.slane %v315, 1
        %v317 = vadd.f32 %v315, %v316
        %v318 = vmul.f32 %v308, %v281
        %v319 = vmul.f32 %v317, %v281
        %v320 = vadd.f32 %v318, 1e-05
        %v321 = vadd.f32 %v319, 1e-05
        %v322 = vrsqrt.pop %v320
        %v323 = vrsqrt.pop %v321
        %v324 = vmul.f32 %v284, %v322
        %v325 = vmul.f32 %v285, %v323
        %v326 = vmul.f32 %v286, %v322
        %v327 = vmul.f32 %v287, %v323
        %v328 = vmul.f32 %v288, %v322
        %v329 = vmul.f32 %v289, %v323
        %v330 = vmul.f32 %v290, %v322
        %v331 = vmul.f32 %v291, %v323
        %v332 = vld [vmem:[%s2] sm:$0xff]
        %v333 = vld [vmem:[%s2 + $0x8] sm:$0xff]
        %v334 = vld [vmem:[%s2 + $0x10] sm:$0xff]
        %v335 = vld [vmem:[%s2 + $0x18] sm:$0xff]
        %337 = vset.pattern.permute.xlu0 0
        %338 = vperm.xlu0 %337, %v332
        %v339 = vpop.permute.xlu0 %338
        %342 = vset.pattern.permute.xlu0 0
        %343 = vperm.xlu0 %342, %v333
        %v344 = vpop.permute.xlu0 %343
        %347 = vset.pattern.permute.xlu0 0
        %348 = vperm.xlu0 %347, %v334
        %v349 = vpop.permute.xlu0 %348
        %352 = vset.pattern.permute.xlu0 0
        %353 = vperm.xlu0 %352, %v335
        %v354 = vpop.permute.xlu0 %353
        %v356 = vmul.f32 %v324, %v339
        %v357 = vmul.f32 %v325, %v339
        %v358 = vmul.f32 %v326, %v344
        %v359 = vmul.f32 %v327, %v344
        %v360 = vmul.f32 %v328, %v349
        %v361 = vmul.f32 %v329, %v349
        %v362 = vmul.f32 %v330, %v354
        %v363 = vmul.f32 %v331, %v354
        %v364 = vld [vmem:[%s3] sm:$0xff]
        %v365 = vld [vmem:[%s3 + $0x8] sm:$0xff]
        %v366 = vld [vmem:[%s3 + $0x10] sm:$0xff]
        %v367 = vld [vmem:[%s3 + $0x18] sm:$0xff]
        %369 = vset.pattern.permute.xlu0 0
        %370 = vperm.xlu0 %369, %v364
        %v371 = vpop.permute.xlu0 %370
        %374 = vset.pattern.permute.xlu0 0
        %375 = vperm.xlu0 %374, %v365
        %v376 = vpop.permute.xlu0 %375
        %379 = vset.pattern.permute.xlu0 0
        %380 = vperm.xlu0 %379, %v366
        %v381 = vpop.permute.xlu0 %380
        %384 = vset.pattern.permute.xlu0 0
        %385 = vperm.xlu0 %384, %v367
        %v386 = vpop.permute.xlu0 %385
        %v388 = vadd.f32 %v356, %v371
        %v389 = vadd.f32 %v357, %v371
        %v390 = vadd.f32 %v358, %v376
        %v391 = vadd.f32 %v359, %v376
        %v392 = vadd.f32 %v360, %v381
        %v393 = vadd.f32 %v361, %v381
        %v394 = vadd.f32 %v362, %v386
        %v395 = vadd.f32 %v363, %v386
        %s396 = sld [smem:[#allocation2]]
        %v397 = vld [vmem:[%s1] sm:$0xff]
        %v398 = vld [vmem:[%s1 + $0x8] sm:$0xff]
        %v399 = vld [vmem:[%s1 + $0x10] sm:$0xff]
        %v400 = vld [vmem:[%s1 + $0x18] sm:$0xff]
        %v401 = vld [vmem:[%s1 + $0x20] sm:$0xff]
        %v402 = vld [vmem:[%s1 + $0x28] sm:$0xff]
        %vm403 = vcmask 261120
        %v405 = vsel %vm403, %v397, 0
        %v408 = vsel %vm403, %v398, 0
        %v411 = vsel %vm403, %v399, 0
        %v414 = vsel %vm403, %v400, 0
        %v417 = vsel %vm403, %v401, 0
        %v420 = vsel %vm403, %v402, 0
        %422 = vmatprep.subr.mxu0 %v389
        %423 = vmatpush1.msra.mxu0 %v388
        %424 = vmatprep.subr.mxu0 %v391
        %425 = vmatpush1.msra.mxu0 %v390
        %426 = vmatprep.subr.mxu0 %v393
        %427 = vmatpush1.msra.mxu0 %v392
        %428 = vmatprep.subr.mxu0 %v395
        %429 = vmatpush1.msra.mxu0 %v394
        %430 = vmatprep.subr.mxu0 0.0
        %431 = vmatpush1.msra.mxu0 0.0
        %432 = vmatprep.subr.mxu0 0.0
        %433 = vmatpush1.msra.mxu0 0.0
        %434 = vmatprep.subr.mxu0 0.0
        %435 = vmatpush1.msra.mxu0 0.0
        %436 = vmatprep.subr.mxu0 0.0
        %437 = vmatpush1.msra.mxu0 0.0
        %438 = vmatprep.subr.mxu0 0.0
        %439 = vmatpush1.msra.mxu0 0.0
        %440 = vmatprep.subr.mxu0 0.0
        %441 = vmatpush1.msra.mxu0 0.0
        %442 = vmatprep.subr.mxu0 0.0
        %443 = vmatpush1.msra.mxu0 0.0
        %444 = vmatprep.subr.mxu0 0.0
        %445 = vmatpush1.msra.mxu0 0.0
        %446 = vmatprep.subr.mxu0 0.0
        %447 = vmatpush1.msra.mxu0 0.0
        %448 = vmatprep.subr.mxu0 0.0
        %449 = vmatpush1.msra.mxu0 0.0
        %450 = vmatprep.subr.mxu0 0.0
        %451 = vmatpush1.msra.mxu0 0.0
        %452 = vmatprep.subr.mxu0 0.0
        %453 = vmatpush1.msra.mxu0 0.0
        %454 = vmatprep.subr.mxu0 0.0
        %455 = vmatpush1.msra.mxu0 0.0
        %456 = vmatprep.subr.mxu0 0.0
        %457 = vmatpush1.msra.mxu0 0.0
        %458 = vmatprep.subr.mxu0 0.0
        %459 = vmatpush1.msra.mxu0 0.0
        %460 = vmatprep.subr.mxu0 0.0
        %461 = vmatpush1.msra.mxu0 0.0
        %462 = vmatprep.subr.mxu0 0.0
        %463 = vmatpush1.msra.mxu0 0.0
        %464 = vmatprep.subr.mxu0 0.0
        %465 = vmatpush1.msra.mxu0 0.0
        %466 = vmatprep.subr.mxu0 0.0
        %467 = vmatpush1.msra.mxu0 0.0
        %468 = vmatprep.subr.mxu0 0.0
        %469 = vmatpush1.msra.mxu0 0.0
        %470 = vmatprep.subr.mxu0 0.0
        %471 = vmatpush1.msra.mxu0 0.0
        %472 = vmatprep.subr.mxu0 0.0
        %473 = vmatpush1.msra.mxu0 0.0
        %474 = vmatprep.subr.mxu0 0.0
        %475 = vmatpush1.msra.mxu0 0.0
        %476 = vmatprep.subr.mxu0 0.0
        %477 = vmatpush1.msra.mxu0 0.0
        %478 = vmatprep.subr.mxu0 0.0
        %479 = vmatpush1.msra.mxu0 0.0
        %480 = vmatprep.subr.mxu0 0.0
        %481 = vmatpush1.msra.mxu0 0.0
        %482 = vmatprep.subr.mxu0 0.0
        %483 = vmatpush1.msra.mxu0 0.0
        %484 = vmatprep.subr.mxu0 0.0
        %485 = vmatpush1.msra.mxu0 0.0
        %486 = vmatprep.mubr.f32.mxu0 0.0
        %487 = vmatmul.mubr.f32.gmra.mrb[0].mxu0 %v405
        %v488 = vpop.f32.mrb[0].mxu0
        %v489 = vadd.f32 0.0, %v488
        %v490 = vpop.f32.mrb[0].mxu0
        %v491 = vadd.f32 0.0, %v490
        %492 = vmatprep.mubr.f32.mxu0 0.0
        %493 = vmatmul.mubr.f32.gmra.mrb[0].mxu0 %v408
        %v494 = vpop.f32.mrb[0].mxu0
        %v495 = vadd.f32 0.0, %v494
        %v496 = vpop.f32.mrb[0].mxu0
        %v497 = vadd.f32 0.0, %v496
        %498 = vmatprep.mubr.f32.mxu0 0.0
        %499 = vmatmul.mubr.f32.gmra.mrb[0].mxu0 %v411
        %v500 = vpop.f32.mrb[0].mxu0
        %v501 = vadd.f32 0.0, %v500
        %v502 = vpop.f32.mrb[0].mxu0
        %v503 = vadd.f32 0.0, %v502
        %504 = vmatprep.mubr.f32.mxu0 0.0
        %505 = vmatmul.mubr.f32.gmra.mrb[0].mxu0 %v414
        %v506 = vpop.f32.mrb[0].mxu0
        %v507 = vadd.f32 0.0, %v506
        %v508 = vpop.f32.mrb[0].mxu0
        %v509 = vadd.f32 0.0, %v508
        %510 = vmatprep.mubr.f32.mxu0 0.0
        %511 = vmatmul.mubr.f32.gmra.mrb[0].mxu0 %v417
        %v512 = vpop.f32.mrb[0].mxu0
        %v513 = vadd.f32 0.0, %v512
        %v514 = vpop.f32.mrb[0].mxu0
        %v515 = vadd.f32 0.0, %v514
        %516 = vmatprep.mubr.f32.mxu0 0.0
        %517 = vmatmul.mubr.f32.gmra.mrb[0].mxu0 %v420
        %v518 = vpop.f32.mrb[0].mxu0
        %v519 = vadd.f32 0.0, %v518
        %v520 = vpop.f32.mrb[0].mxu0
        %v521 = vadd.f32 0.0, %v520
        %522 = vdwg.mxu0
        %v523 = vstv %s396
        %v524 = vmax.f32 %v489, %v523
        %v525 = vmax.f32 %v491, %v523
        %v526 = vmax.f32 %v495, %v523
        %v527 = vmax.f32 %v497, %v523
        %v528 = vmax.f32 %v501, %v523
        %v529 = vmax.f32 %v503, %v523
        %v530 = vmax.f32 %v507, %v523
        %v531 = vmax.f32 %v509, %v523
        %v532 = vadd.f32 %v524, %v528
        %v533 = vadd.f32 %v525, %v529
        %v534 = vadd.f32 %v526, %v530
        %v535 = vadd.f32 %v527, %v531
        %v536 = vmax.f32 %v513, %v523
        %v537 = vmax.f32 %v515, %v523
        %v538 = vmax.f32 %v519, %v523
        %v539 = vmax.f32 %v521, %v523
        %v540 = vadd.f32 %v532, %v536
        %v541 = vadd.f32 %v533, %v537
        %v542 = vadd.f32 %v534, %v538
        %v543 = vadd.f32 %v535, %v539
        %s544 = smul.f32 %s396, 3.0
        %v545 = vstv %s544
        %v546 = vsub.f32 %v540, %v545
        %v547 = vsub.f32 %v541, %v545
        %v548 = vsub.f32 %v542, %v545
        %v549 = vsub.f32 %v543, %v545
        %550 = vst [vmem:[%s243] sm:$0xff] %v546
        %551 = vst [vmem:[%s243 + $0x8] sm:$0xff] %v547
        %552 = vst [vmem:[%s243 + $0x10] sm:$0xff] %v548
        %553 = vst [vmem:[%s243 + $0x18] sm:$0xff] %v549
        %s554 = sand.u32 %s154, 1
        %s555 = scalar_lea.sflag [#allocation4], %s554
        %s556 = sand.u32 %s154, 1
        %s557 = smul.addr %s556, 32
        %s558 = scalar_lea.vmem [#allocation3], %s557
        // Predicated region
        $region41: #{tpu_custom_call.1} parent=39 // pred_check
          %p559 = pneg %p164
        $region42: #{tpu_custom_call.1} parent=39 // pred_check_branch
          %561 = sbr.rel (%p559) target = $region44
        $region43: #{tpu_custom_call.1} parent=39 // pred_region
          %s562 = smul.u32 2, %s25
          %s564 = ssub.s32 512, 512
          %565 = vsyncadd %s555, %s564
          %s566 = smul.addr %s24, 4
          %s567 = sadd.s32 %s562, %s566
          %s568 = smul.addr %s567, 128
          %s569 = scalar_lea.hbm %s5, %s568
          %s570 = sshll.u32 %s558, 4
          %s571 = int_to_ptr.vmem [resolvable:$true] %s570
          %576 = dma.vmem_to_hbm [thread:$0]  %s571, 512, %s569, %s555, 256, 256, 16
        $region44: #{tpu_custom_call.1} parent=39 // pred_fallthru
          _
      $region40: #{tpu_custom_call.1} parent=5 // pred_fallthru
        _
      %p577 = scmp.le.s32.totalorder 2, %s15
      // Predicated region
      $region45: #{tpu_custom_call.1} parent=5 // pred_check
        %p578 = pneg %p577
      $region46: #{tpu_custom_call.1} parent=5 // pred_check_branch
        %580 = sbr.rel (%p578) target = $region48
      $region47: #{tpu_custom_call.1} parent=5 // pred_region
        %s581 = ssub.s32 %s15, 2
        // Predicated region
        $region49: #{tpu_custom_call.1} parent=47 // pred_check
          %p582 = pneg %p170
        $region50: #{tpu_custom_call.1} parent=47 // pred_check_branch
          %584 = sbr.rel (%p582) target = $region52
        $region51: #{tpu_custom_call.1} parent=47 // pred_region
          %s585 = sand.u32 %s155, 1
          %s586 = scalar_lea.sflag [#allocation4], %s585
          %s587 = sand.u32 %s155, 1
          %s588 = smul.addr %s587, 32
          %s589 = scalar_lea.vmem [#allocation3], %s588
          %590 = dma.done %s586, 512
        $region52: #{tpu_custom_call.1} parent=47 // pred_fallthru
          _
      $region48: #{tpu_custom_call.1} parent=5 // pred_fallthru
        _
    $region6: #{tpu_custom_call.1} parent=1 // loop_footer
      %s19 = sadd.s32 1, %s15
    $region7: #{tpu_custom_call.1} parent=1 // loop_footer_branch
      %14 = sbr.rel target = $region3
    $region8: #{tpu_custom_call.1} parent=1 // loop_exit
      _
    %591 = vsyncpa [#allocation4], 1
    %s592 = scalar_lea.sflag [#allocation4], 1
    %593 = vsyncpa %s592, 1

</llo_original>
